<compile_context>
chip_gen: v7x
topology: tpu7x:2x2x1
jax: 0.10.0
libtpu: 0.0.40
codegen_flags: <defaults>
</compile_context>

<pallas_src>
import functools

import jax
import jax.numpy as jnp
import numpy as np
from jax.experimental import pallas as pl
from jax.experimental.pallas import tpu as pltpu


def _round_up(x, m):
    return (x + m - 1) // m * m


def _pick_spatial_tile(hw):
    # Largest power-of-two tile (multiple of 8 sublanes) that divides HW.
    for t in (4096, 2048, 1024, 512, 256, 128, 64, 32, 16, 8):
        if hw % t == 0:
            return t
    return hw


# ----------------------------- Pallas kernel ---------------------------------
def _basic_ce_kernel(patches_ref, wconv_ref, bconv_ref, wcls_ref, bcls_ref,
                     feat_ref, logits_ref, acc_ref, *, inv_hw):
    s = pl.program_id(1)

    # Zero the per-batch accumulator at the first spatial tile.
    @pl.when(s == 0)
    def _():
        acc_ref[...] = jnp.zeros_like(acc_ref)

    # Backbone hot path: im2col matmul (bf16 on MXU, f32 accumulate) + bias + ReLU.
    conv = jnp.dot(patches_ref[...], wconv_ref[...],
                   preferred_element_type=jnp.float32)        # (TILE_S, F_pad)
    act = jnp.maximum(conv + bconv_ref[...], 0.0)

    # Partial spatial sum for this tile (global average pool is finished later).
    acc_ref[...] += jnp.sum(act, axis=0, keepdims=True)       # (1, F_pad)

    # Finalize on the last spatial tile: mean, feature write, classifier.
    @pl.when(s == pl.num_programs(1) - 1)
    def _():
        feat = acc_ref[...] * inv_hw                          # (1, F_pad) f32
        feat_ref[...] = feat[None].astype(feat_ref.dtype)     # (1, 1, F_pad)
        logits = jnp.dot(feat, wcls_ref[...],
                         preferred_element_type=jnp.float32) + bcls_ref[...]
        logits_ref[...] = logits[None].astype(logits_ref.dtype)


def basic_ce_forward(x_nchw, w_conv, b_conv, w_cls, b_cls, *, spatial_tile=None):
    """x_nchw: (B, C, H, W) f32.  w_conv: (C*9, F) rows ordered (kh, kw, c).
    Returns (feature_map (B, F), logits (B, n_classes))."""
    B, C, H, W = x_nchw.shape
    P, F = w_conv.shape
    n_classes = w_cls.shape[1]
    HW = H * W
    assert P == C * 9

    F_pad = _round_up(F, 128)
    N_pad = _round_up(n_classes, 128)

    tile = spatial_tile if spatial_tile is not None else _pick_spatial_tile(HW)
    assert HW % tile == 0 and tile % 8 == 0, (HW, tile)
    s_steps = HW // tile

    # --- glue: im2col (3x3, pad=1, stride=1) built directly in row-major (b,h,w)
    #     order with (kh,kw,c) columns — only the input is transposed (NCHW->NHWC),
    #     never the 9x-blown-up patch array.
    x_nhwc = jnp.transpose(x_nchw, (0, 2, 3, 1))               # (B, H, W, C)
    xp = jnp.pad(x_nhwc, ((0, 0), (1, 1), (1, 1), (0, 0)))
    cols = [xp[:, dh:dh + H, dw:dw + W, :]                     # each (B, H, W, C)
            for dh in range(3) for dw in range(3)]
    patches2d = (jnp.concatenate(cols, axis=-1)                # (B, H, W, 9*C)
                 .reshape(B * HW, P)
                 .astype(jnp.bfloat16))                        # (B*HW, P) bf16

    # Zero-pad output dims to lane-dense 128 multiples; padded columns stay zero
    # through bias / ReLU / mean / classifier and are sliced off afterwards.
    w_conv_p = jnp.zeros((P, F_pad), jnp.float32).at[:, :F].set(w_conv).astype(jnp.bfloat16)
    b_conv_p = jnp.zeros((1, F_pad), jnp.float32).at[:, :F].set(b_conv)
    w_cls_p = jnp.zeros((F_pad, N_pad), jnp.float32).at[:F, :n_classes].set(w_cls)
    b_cls_p = jnp.zeros((1, N_pad), jnp.float32).at[:, :n_classes].set(b_cls)

    kernel = functools.partial(_basic_ce_kernel, inv_hw=1.0 / HW)

    cost = pl.CostEstimate(
        flops=2 * B * HW * P * F_pad + 2 * B * F_pad * N_pad,
        transcendentals=0,
        bytes_accessed=(patches2d.size * 2 + w_conv_p.size * 2
                        + (b_conv_p.size + w_cls_p.size + b_cls_p.size) * 4
                        + B * (F_pad + N_pad) * 4))

    feat_p, logits_p = pl.pallas_call(
        kernel,
        out_shape=(
            jax.ShapeDtypeStruct((B, 1, F_pad), jnp.float32),   # feature_map (padded)
            jax.ShapeDtypeStruct((B, 1, N_pad), jnp.float32),   # logits (padded)
        ),
        grid_spec=pltpu.PrefetchScalarGridSpec(
            num_scalar_prefetch=0,
            grid=(B, s_steps),                                  # reduction axis last
            in_specs=[
                pl.BlockSpec((tile, P), lambda b, s: (b * s_steps + s, 0)),
                pl.BlockSpec((P, F_pad), lambda b, s: (0, 0)),      # resident weights
                pl.BlockSpec((1, F_pad), lambda b, s: (0, 0)),
                pl.BlockSpec((F_pad, N_pad), lambda b, s: (0, 0)),
                pl.BlockSpec((1, N_pad), lambda b, s: (0, 0)),
            ],
            out_specs=[
                pl.BlockSpec((1, 1, F_pad), lambda b, s: (b, 0, 0)),
                pl.BlockSpec((1, 1, N_pad), lambda b, s: (b, 0, 0)),
            ],
            scratch_shapes=[pltpu.VMEM((1, F_pad), jnp.float32)],   # spatial-sum acc
        ),
        compiler_params=pltpu.CompilerParams(
            dimension_semantics=("parallel", "arbitrary"),
            vmem_limit_bytes=32 * 1024 * 1024),
        cost_estimate=cost,
    )(patches2d, w_conv_p, b_conv_p, w_cls_p, b_cls_p)

    feat = feat_p.reshape(B, F_pad)[:, :F]
    logits = logits_p.reshape(B, N_pad)[:, :n_classes]
    return feat, logits


# ----------------------------- reference (plain JAX) -------------------------
def _reference(x_nchw, w_conv, b_conv, w_cls, b_cls):
    B, C, H, W = x_nchw.shape
    x_nhwc = jnp.transpose(x_nchw, (0, 2, 3, 1))
    xp = jnp.pad(x_nhwc, ((0, 0), (1, 1), (1, 1), (0, 0)))
    cols = [xp[:, dh:dh + H, dw:dw + W, :] for dh in range(3) for dw in range(3)]
    patches = jnp.concatenate(cols, axis=-1).reshape(B, H * W, C * 9)
    conv = jnp.einsum('bsp,pf->bsf',
                      patches.astype(jnp.bfloat16), w_conv.astype(jnp.bfloat16),
                      preferred_element_type=jnp.float32)
    act = jnp.maximum(conv + b_conv, 0.0)
    feat = jnp.mean(act, axis=1)
    logits = feat @ w_cls + b_cls
    return feat, logits


# ----------------------------------- main -------------------------------------
if __name__ == "__main__":
    B, C, H, W = 2, 4, 16, 16        # input images, NCHW (PyTorch convention)
    feature_dim = 32                  # backbone.feature_dim
    n_classes = 10

    key = jax.random.PRNGKey(0)
    kx, kwc, kbc, kwl, kbl = jax.random.split(key, 5)

    x = jax.random.normal(kx, (B, C, H, W), dtype=jnp.float32)

    # Deterministic synthetic parameters.
    P = C * 3 * 3
    w_conv = jax.random.normal(kwc, (P, feature_dim), dtype=jnp.float32) * 0.1
    b_conv = jax.random.normal(kbc, (1, feature_dim), dtype=jnp.float32) * 0.01
    # nn.Linear(feature_dim, n_classes): stored as (out, in) in torch; we keep (in, out).
    w_cls = jax.random.normal(kwl, (feature_dim, n_classes), dtype=jnp.float32) * 0.1
    b_cls = jax.random.normal(kbl, (1, n_classes), dtype=jnp.float32) * 0.01

    feat_ref, logits_ref = _reference(x, w_conv, b_conv, w_cls, b_cls)

    # Multi-step spatial accumulation path (grid = (B, 4)).
    feat, logits = basic_ce_forward(x, w_conv, b_conv, w_cls, b_cls, spatial_tile=64)
    jax.block_until_ready((feat, logits))
    np.testing.assert_allclose(np.asarray(feat), np.asarray(feat_ref), rtol=1e-3, atol=1e-3)
    np.testing.assert_allclose(np.asarray(logits), np.asarray(logits_ref), rtol=1e-3, atol=1e-3)

    # Default tile selection path (single spatial step at this toy size).
    feat2, logits2 = basic_ce_forward(x, w_conv, b_conv, w_cls, b_cls)
    jax.block_until_ready((feat2, logits2))
    np.testing.assert_allclose(np.asarray(feat2), np.asarray(feat_ref), rtol=1e-3, atol=1e-3)
    np.testing.assert_allclose(np.asarray(logits2), np.asarray(logits_ref), rtol=1e-3, atol=1e-3)

    assert feat.shape == (B, feature_dim) and logits.shape == (B, n_classes)
    print("KERNEL_OK")
</pallas_src>

<mosaic_0001>
module attributes {stable_mosaic.version = 11 : i64} {
  func.func @_basic_ce_kernel(%arg0: i32, %arg1: i32, %arg2: memref<64x36xbf16, #tpu.memory_space<vmem>>, %arg3: memref<36x128xbf16, #tpu.memory_space<vmem>>, %arg4: memref<1x128xf32, #tpu.memory_space<vmem>>, %arg5: memref<128x128xf32, #tpu.memory_space<vmem>>, %arg6: memref<1x128xf32, #tpu.memory_space<vmem>>, %arg7: memref<1x1x128xf32, #tpu.memory_space<vmem>>, %arg8: memref<1x1x128xf32, #tpu.memory_space<vmem>>, %arg9: memref<1x128xf32, #tpu.memory_space<vmem>>) attributes {dimension_semantics = [#tpu.dimension_semantics<parallel>, #tpu.dimension_semantics<arbitrary>], iteration_bounds = array<i64: 2, 4>, scalar_prefetch = 0 : i64, scratch_operands = 1 : i64, tpu.core_type = #tpu.core_type<tc>, window_params = [{transform_indices = @transform_0, window_bounds = array<i64: 64, 36>}, {pipeline_mode = #tpu.pipeline_mode<synchronous>, transform_indices = @transform_1, window_bounds = array<i64: 36, 128>}, {pipeline_mode = #tpu.pipeline_mode<synchronous>, transform_indices = @transform_2, window_bounds = array<i64: 1, 128>}, {pipeline_mode = #tpu.pipeline_mode<synchronous>, transform_indices = @transform_3, window_bounds = array<i64: 128, 128>}, {pipeline_mode = #tpu.pipeline_mode<synchronous>, transform_indices = @transform_4, window_bounds = array<i64: 1, 128>}, {transform_indices = @transform_5, window_bounds = array<i64: 1, 1, 128>}, {transform_indices = @transform_6, window_bounds = array<i64: 1, 1, 128>}]} {
    %c0_i32 = arith.constant 0 : i32
    %0 = arith.cmpi eq, %arg1, %c0_i32 : i32
    %1 = arith.extui %0 : i1 to i32
    %c0_i32_0 = arith.constant 0 : i32
    %2 = arith.cmpi ne, %1, %c0_i32_0 : i32
    scf.if %2 {
      %cst_13 = arith.constant 0.000000e+00 : f32
      %19 = vector.broadcast %cst_13 : f32 to vector<1x128xf32>
      %c0_14 = arith.constant 0 : index
      %c0_15 = arith.constant 0 : index
      %20 = vector.load %arg9[%c0_14, %c0_15] : memref<1x128xf32, #tpu.memory_space<vmem>>, vector<1x128xf32>
      tpu.vector_store %arg9[%c0_14, %c0_15], %19 {strides = array<i32>} : memref<1x128xf32, #tpu.memory_space<vmem>>, vector<1x128xf32>,
    } else {
    }
    %c0 = arith.constant 0 : index
    %c0_1 = arith.constant 0 : index
    %3 = vector.load %arg2[%c0, %c0_1] : memref<64x36xbf16, #tpu.memory_space<vmem>>, vector<64x36xbf16>
    %c0_2 = arith.constant 0 : index
    %c0_3 = arith.constant 0 : index
    %4 = vector.load %arg3[%c0_2, %c0_3] : memref<36x128xbf16, #tpu.memory_space<vmem>>, vector<36x128xbf16>
    %cst = arith.constant dense<0.000000e+00> : vector<64x128xf32>
    %5 = tpu.matmul %3, %4, %cst {dimension_numbers = #tpu.dot_dimension_numbers<[1], [0], [0], [1], [0, 0, 1, 1], [], []>} : vector<64x36xbf16>, vector<36x128xbf16>, vector<64x128xf32> -> vector<64x128xf32>
    %c0_4 = arith.constant 0 : index
    %c0_5 = arith.constant 0 : index
    %6 = vector.load %arg4[%c0_4, %c0_5] : memref<1x128xf32, #tpu.memory_space<vmem>>, vector<1x128xf32>
    %7 = vector.broadcast %6 : vector<1x128xf32> to vector<64x128xf32>
    %8 = arith.addf %5, %7 : vector<64x128xf32>
    %cst_6 = arith.constant 0.000000e+00 : f32
    %9 = vector.broadcast %cst_6 : f32 to vector<64x128xf32>
    %10 = arith.maximumf %8, %9 : vector<64x128xf32>
    %c0_7 = arith.constant 0 : index
    %c0_8 = arith.constant 0 : index
    %11 = vector.load %arg9[%c0_7, %c0_8] : memref<1x128xf32, #tpu.memory_space<vmem>>, vector<1x128xf32>
    %cst_9 = arith.constant dense<0.000000e+00> : vector<128xf32>
    %12 = vector.multi_reduction <add>, %10, %cst_9 [0] : vector<64x128xf32> to vector<128xf32>
    %13 = vector.shape_cast %12 : vector<128xf32> to vector<1x128xf32>
    %14 = arith.addf %11, %13 : vector<1x128xf32>
    %c0_10 = arith.constant 0 : index
    %c0_11 = arith.constant 0 : index
    %15 = vector.load %arg9[%c0_10, %c0_11] : memref<1x128xf32, #tpu.memory_space<vmem>>, vector<1x128xf32>
    tpu.vector_store %arg9[%c0_10, %c0_11], %14 {strides = array<i32>} : memref<1x128xf32, #tpu.memory_space<vmem>>, vector<1x128xf32>,
    %c3_i32 = arith.constant 3 : i32
    %16 = arith.cmpi eq, %arg1, %c3_i32 : i32
    %17 = arith.extui %16 : i1 to i32
    %c0_i32_12 = arith.constant 0 : i32
    %18 = arith.cmpi ne, %17, %c0_i32_12 : i32
    scf.if %18 {
      %c0_13 = arith.constant 0 : index
      %c0_14 = arith.constant 0 : index
      %19 = vector.load %arg9[%c0_13, %c0_14] : memref<1x128xf32, #tpu.memory_space<vmem>>, vector<1x128xf32>
      %cst_15 = arith.constant 3.906250e-03 : f32
      %20 = vector.broadcast %cst_15 : f32 to vector<1x128xf32>
      %21 = arith.mulf %19, %20 : vector<1x128xf32>
      %22 = vector.shape_cast %21 : vector<1x128xf32> to vector<1x1x128xf32>
      %c0_16 = arith.constant 0 : index
      %c0_17 = arith.constant 0 : index
      %c0_18 = arith.constant 0 : index
      %23 = vector.load %arg7[%c0_16, %c0_17, %c0_18] : memref<1x1x128xf32, #tpu.memory_space<vmem>>, vector<1x1x128xf32>
      tpu.vector_store %arg7[%c0_16, %c0_17, %c0_18], %22 {strides = array<i32>} : memref<1x1x128xf32, #tpu.memory_space<vmem>>, vector<1x1x128xf32>,
      %c0_19 = arith.constant 0 : index
      %c0_20 = arith.constant 0 : index
      %24 = vector.load %arg5[%c0_19, %c0_20] : memref<128x128xf32, #tpu.memory_space<vmem>>, vector<128x128xf32>
      %cst_21 = arith.constant dense<0.000000e+00> : vector<1x128xf32>
      %25 = tpu.matmul %21, %24, %cst_21 {dimension_numbers = #tpu.dot_dimension_numbers<[1], [0], [0], [1], [0, 0, 1, 1], [], []>} : vector<1x128xf32>, vector<128x128xf32>, vector<1x128xf32> -> vector<1x128xf32>
      %c0_22 = arith.constant 0 : index
      %c0_23 = arith.constant 0 : index
      %26 = vector.load %arg6[%c0_22, %c0_23] : memref<1x128xf32, #tpu.memory_space<vmem>>, vector<1x128xf32>
      %27 = arith.addf %25, %26 : vector<1x128xf32>
      %28 = vector.shape_cast %27 : vector<1x128xf32> to vector<1x1x128xf32>
      %c0_24 = arith.constant 0 : index
      %c0_25 = arith.constant 0 : index
      %c0_26 = arith.constant 0 : index
      %29 = vector.load %arg8[%c0_24, %c0_25, %c0_26] : memref<1x1x128xf32, #tpu.memory_space<vmem>>, vector<1x1x128xf32>
      tpu.vector_store %arg8[%c0_24, %c0_25, %c0_26], %28 {strides = array<i32>} : memref<1x1x128xf32, #tpu.memory_space<vmem>>, vector<1x1x128xf32>,
    } else {
    }
    return
  }
  func.func @transform_0(%arg0: i32, %arg1: i32) -> (i32, i32) {
    %c4_i32 = arith.constant 4 : i32
    %0 = arith.muli %arg0, %c4_i32 : i32
    %1 = arith.addi %0, %arg1 : i32
    %c0_i32 = arith.constant 0 : i32
    %c0_i32_0 = arith.constant 0 : i32
    return %1, %c0_i32 : i32, i32
  }
  func.func @transform_1(%arg0: i32, %arg1: i32) -> (i32, i32) {
    %c0_i32 = arith.constant 0 : i32
    %c0_i32_0 = arith.constant 0 : i32
    %c0_i32_1 = arith.constant 0 : i32
    return %c0_i32, %c0_i32_0 : i32, i32
  }
  func.func @transform_2(%arg0: i32, %arg1: i32) -> (i32, i32) {
    %c0_i32 = arith.constant 0 : i32
    %c0_i32_0 = arith.constant 0 : i32
    %c0_i32_1 = arith.constant 0 : i32
    return %c0_i32, %c0_i32_0 : i32, i32
  }
  func.func @transform_3(%arg0: i32, %arg1: i32) -> (i32, i32) {
    %c0_i32 = arith.constant 0 : i32
    %c0_i32_0 = arith.constant 0 : i32
    %c0_i32_1 = arith.constant 0 : i32
    return %c0_i32, %c0_i32_0 : i32, i32
  }
  func.func @transform_4(%arg0: i32, %arg1: i32) -> (i32, i32) {
    %c0_i32 = arith.constant 0 : i32
    %c0_i32_0 = arith.constant 0 : i32
    %c0_i32_1 = arith.constant 0 : i32
    return %c0_i32, %c0_i32_0 : i32, i32
  }
  func.func @transform_5(%arg0: i32, %arg1: i32) -> (i32, i32, i32) {
    %c0_i32 = arith.constant 0 : i32
    %c0_i32_0 = arith.constant 0 : i32
    %c0_i32_1 = arith.constant 0 : i32
    return %arg0, %c0_i32, %c0_i32_0 : i32, i32, i32
  }
  func.func @transform_6(%arg0: i32, %arg1: i32) -> (i32, i32, i32) {
    %c0_i32 = arith.constant 0 : i32
    %c0_i32_0 = arith.constant 0 : i32
    %c0_i32_1 = arith.constant 0 : i32
    return %arg0, %c0_i32, %c0_i32_0 : i32, i32, i32
  }
}

</mosaic_0001>

<llo_original>
// kernel: tpu_custom_call.1
$region0: #{tpu_custom_call.1}
  #allocation0 [shape = 'u32[]', space=smem, size = 0x4, offset = 0x4, fixed_abs, tag = 'smem constant byte address 0x4 - core index']
  #allocation1 [shape = 'u32[144,128]{1,0:T(1,128)}', space=vmem, size = 0x12000, scoped, tag = 'internal scratch']
  #allocation2 [shape = 'f32[1,128]{1,0:T(1,128)}', space=vmem, size = 0x200, scoped, tag = 'scratch operand']
  %s0 = inlined_call_operand.vmem [shape: bf16[512,36], index: 0, kind: input, shape index: {}]
  %s1 = inlined_call_operand.vmem [shape: bf16[36,128], index: 1, kind: input, shape index: {}]
  %s2 = inlined_call_operand.vmem [shape: f32[1,128], index: 2, kind: input, shape index: {}]
  %s3 = inlined_call_operand.vmem [shape: f32[128,128], index: 3, kind: input, shape index: {}]
  %s4 = inlined_call_operand.vmem [shape: f32[1,128], index: 4, kind: input, shape index: {}]
  %s5 = inlined_call_operand.hbm [shape: f32[2,1,128], index: 5, kind: output, shape index: {0}]
  %s6 = inlined_call_operand.hbm [shape: f32[2,1,128], index: 6, kind: output, shape index: {1}]
  %7 = xla_tuple %s5, %s6
  %s8 = sld [smem:[#allocation0]]
  $region69: #{tpu_custom_call.1} parent=0
    _
  %s10 = ssub.s32 1, %s8
  %s11 = scalar_select 0, %s10, %s8
  $region1: #{tpu_custom_call.1} parent=0
    #allocation3 [shape = 'u8[1024]{0}', space=vmem, size = 0x400, scoped, tag = 'output window, operand 0']
    #allocation4 [shape = 's32[2]{0}', space=sflag, size = 0x8, scoped, tag = 'scoped memory for tpu_custom_call.1']
    #allocation5 [shape = 'u8[1024]{0}', space=vmem, size = 0x400, scoped, tag = 'output window, operand 1']
    #allocation6 [shape = 's32[2]{0}', space=sflag, size = 0x8, scoped, tag = 'scoped memory for tpu_custom_call.1']
    %12 = vsyncpa [#allocation4], 0
    %s13 = scalar_lea.sflag [#allocation4], 1
    %14 = vsyncpa %s13, 0
    %15 = vsyncpa [#allocation6], 0
    %s16 = scalar_lea.sflag [#allocation6], 1
    %17 = vsyncpa %s16, 0
    loop: start=0, step=1, limit=10
    $region2: #{tpu_custom_call.1} parent=1 // loop_pre_header
      _
    $region3: #{tpu_custom_call.1} parent=1 // loop_header
      %s19 = sphi 0, %s23
      %p20 = scmp.ge.s32.totalorder %s19, 10
      %s26 = sphi 0, %s38
      %s27 = sphi 0, %s34
      %s28 = sphi 0, %s26
      %s29 = sphi 0, %s27
      %s30 = sphi 0, %s28
      %s31 = sphi 0, %s29
      %s45 = sphi 0, %s47
      %s48 = sphi 0, %s45
      %s49 = sphi 0, %s48
      %s65 = sphi 0, %s49
      %s69 = sphi 0, %s69
      %s71 = sphi 0, %s69
      %s72 = sphi 0, %s71
      %s86 = sphi 0, %s72
      %s90 = sphi 0, %s90
      %s92 = sphi 0, %s90
      %s93 = sphi 0, %s92
      %s107 = sphi 0, %s93
      %s111 = sphi 0, %s111
      %s113 = sphi 0, %s111
      %s114 = sphi 0, %s113
      %s128 = sphi 0, %s114
      %s132 = sphi 0, %s132
      %s134 = sphi 0, %s132
      %s135 = sphi 0, %s134
      %s149 = sphi 0, %s135
      %s155 = sphi 0, %s157
      %s158 = sphi 0, %s155
      %s159 = sphi 0, %s158
      %s175 = sphi 0, %s159
      %s181 = sphi 0, %s183
      %s184 = sphi 0, %s181
      %s185 = sphi 0, %s184
      %s201 = sphi 0, %s185
    $region4: #{tpu_custom_call.1} parent=1 // loop_header_branch
      %22 = sbr.rel (%p20) target = $region8
    $region5: #{tpu_custom_call.1} parent=1 // loop_body
      %s24 = ssub.s32 %s19, 1
      %s25 = ssub.s32 %s19, 2
      %s32 = sadd.s32 1, %s27
      %p33 = scmp.ge.s32.totalorder %s32, 4
      %s34 = scalar_select %p33, 0, %s32
      %s35 = sadd.s32 1, %s26
      %s36 = scalar_select %p33, %s35, %s26
      %p37 = scmp.ge.s32.totalorder %s36, 2
      %s38 = scalar_select %p37, 0, %s36
      %s39 = smul.u32 %s26, 4
      %s40 = sadd.s32 %s39, %s27
      %s41 = smul.u32 %s38, 4
      %s42 = sadd.s32 %s41, %s34
      %s43 = ssub.s32 %s40, %s42
      %p44 = scmp.eq.s32.totalorder %s43, 0
      %s46 = sadd.s32 %s45, 1
      %s47 = scalar_select %p44, %s45, %s46
      %p50 = pneg %p44
      %p51 = scmp.eq.s32.totalorder %s19, 7
      %p52 = por %p50, %p51
      %p53 = scmp.ne.s32.totalorder %s45, %s48
      %p54 = scmp.eq.s32.totalorder %s19, 0
      %p55 = por %p53, %p54
      %p56 = scmp.ne.s32.totalorder %s45, %s48
      %p57 = scmp.eq.s32.totalorder %s24, 7
      %p58 = por %p56, %p57
      %p59 = scmp.ne.s32.totalorder %s48, %s49
      %p60 = scmp.eq.s32.totalorder %s24, 0
      %p61 = por %p59, %p60
      %p62 = scmp.ne.s32.totalorder %s48, %s49
      %p63 = scmp.eq.s32.totalorder %s25, 7
      %p64 = por %p62, %p63
      %p66 = scmp.ne.s32.totalorder %s49, %s65
      %p67 = scmp.eq.s32.totalorder %s25, 0
      %p68 = por %p66, %p67
      %s70 = sadd.s32 %s69, 1
      %p73 = scmp.eq.s32.totalorder %s19, 7
      %p74 = scmp.ne.s32.totalorder %s69, %s71
      %p75 = scmp.eq.s32.totalorder %s19, 0
      %p76 = por %p74, %p75
      %p77 = scmp.ne.s32.totalorder %s69, %s71
      %p78 = scmp.eq.s32.totalorder %s24, 7
      %p79 = por %p77, %p78
      %p80 = scmp.ne.s32.totalorder %s71, %s72
      %p81 = scmp.eq.s32.totalorder %s24, 0
      %p82 = por %p80, %p81
      %p83 = scmp.ne.s32.totalorder %s71, %s72
      %p84 = scmp.eq.s32.totalorder %s25, 7
      %p85 = por %p83, %p84
      %p87 = scmp.ne.s32.totalorder %s72, %s86
      %p88 = scmp.eq.s32.totalorder %s25, 0
      %p89 = por %p87, %p88
      %s91 = sadd.s32 %s90, 1
      %p94 = scmp.eq.s32.totalorder %s19, 7
      %p95 = scmp.ne.s32.totalorder %s90, %s92
      %p96 = scmp.eq.s32.totalorder %s19, 0
      %p97 = por %p95, %p96
      %p98 = scmp.ne.s32.totalorder %s90, %s92
      %p99 = scmp.eq.s32.totalorder %s24, 7
      %p100 = por %p98, %p99
      %p101 = scmp.ne.s32.totalorder %s92, %s93
      %p102 = scmp.eq.s32.totalorder %s24, 0
      %p103 = por %p101, %p102
      %p104 = scmp.ne.s32.totalorder %s92, %s93
      %p105 = scmp.eq.s32.totalorder %s25, 7
      %p106 = por %p104, %p105
      %p108 = scmp.ne.s32.totalorder %s93, %s107
      %p109 = scmp.eq.s32.totalorder %s25, 0
      %p110 = por %p108, %p109
      %s112 = sadd.s32 %s111, 1
      %p115 = scmp.eq.s32.totalorder %s19, 7
      %p116 = scmp.ne.s32.totalorder %s111, %s113
      %p117 = scmp.eq.s32.totalorder %s19, 0
      %p118 = por %p116, %p117
      %p119 = scmp.ne.s32.totalorder %s111, %s113
      %p120 = scmp.eq.s32.totalorder %s24, 7
      %p121 = por %p119, %p120
      %p122 = scmp.ne.s32.totalorder %s113, %s114
      %p123 = scmp.eq.s32.totalorder %s24, 0
      %p124 = por %p122, %p123
      %p125 = scmp.ne.s32.totalorder %s113, %s114
      %p126 = scmp.eq.s32.totalorder %s25, 7
      %p127 = por %p125, %p126
      %p129 = scmp.ne.s32.totalorder %s114, %s128
      %p130 = scmp.eq.s32.totalorder %s25, 0
      %p131 = por %p129, %p130
      %s133 = sadd.s32 %s132, 1
      %p136 = scmp.eq.s32.totalorder %s19, 7
      %p137 = scmp.ne.s32.totalorder %s132, %s134
      %p138 = scmp.eq.s32.totalorder %s19, 0
      %p139 = por %p137, %p138
      %p140 = scmp.ne.s32.totalorder %s132, %s134
      %p141 = scmp.eq.s32.totalorder %s24, 7
      %p142 = por %p140, %p141
      %p143 = scmp.ne.s32.totalorder %s134, %s135
      %p144 = scmp.eq.s32.totalorder %s24, 0
      %p145 = por %p143, %p144
      %p146 = scmp.ne.s32.totalorder %s134, %s135
      %p147 = scmp.eq.s32.totalorder %s25, 7
      %p148 = por %p146, %p147
      %p150 = scmp.ne.s32.totalorder %s135, %s149
      %p151 = scmp.eq.s32.totalorder %s25, 0
      %p152 = por %p150, %p151
      %s153 = ssub.s32 %s26, %s38
      %p154 = scmp.eq.s32.totalorder %s153, 0
      %s156 = sadd.s32 %s155, 1
      %s157 = scalar_select %p154, %s155, %s156
      %p160 = pneg %p154
      %p161 = scmp.eq.s32.totalorder %s19, 7
      %p162 = por %p160, %p161
      %p163 = scmp.ne.s32.totalorder %s155, %s158
      %p164 = scmp.eq.s32.totalorder %s19, 0
      %p165 = por %p163, %p164
      %p166 = scmp.ne.s32.totalorder %s155, %s158
      %p167 = scmp.eq.s32.totalorder %s24, 7
      %p168 = por %p166, %p167
      %p169 = scmp.ne.s32.totalorder %s158, %s159
      %p170 = scmp.eq.s32.totalorder %s24, 0
      %p171 = por %p169, %p170
      %p172 = scmp.ne.s32.totalorder %s158, %s159
      %p173 = scmp.eq.s32.totalorder %s25, 7
      %p174 = por %p172, %p173
      %p176 = scmp.ne.s32.totalorder %s159, %s175
      %p177 = scmp.eq.s32.totalorder %s25, 0
      %p178 = por %p176, %p177
      %s179 = ssub.s32 %s26, %s38
      %p180 = scmp.eq.s32.totalorder %s179, 0
      %s182 = sadd.s32 %s181, 1
      %s183 = scalar_select %p180, %s181, %s182
      %p186 = pneg %p180
      %p187 = scmp.eq.s32.totalorder %s19, 7
      %p188 = por %p186, %p187
      %p189 = scmp.ne.s32.totalorder %s181, %s184
      %p190 = scmp.eq.s32.totalorder %s19, 0
      %p191 = por %p189, %p190
      %p192 = scmp.ne.s32.totalorder %s181, %s184
      %p193 = scmp.eq.s32.totalorder %s24, 7
      %p194 = por %p192, %p193
      %p195 = scmp.ne.s32.totalorder %s184, %s185
      %p196 = scmp.eq.s32.totalorder %s24, 0
      %p197 = por %p195, %p196
      %p198 = scmp.ne.s32.totalorder %s184, %s185
      %p199 = scmp.eq.s32.totalorder %s25, 7
      %p200 = por %p198, %p199
      %p202 = scmp.ne.s32.totalorder %s185, %s201
      %p203 = scmp.eq.s32.totalorder %s25, 0
      %p204 = por %p202, %p203
      %p205 = scmp.le.s32.totalorder 1, %s19
      %p206 = scmp.lt.s32.totalorder %s19, 9
      %p207 = pnand %p205, %p206
      %p208 = pneg %p207
      // Predicated region
      $region9: #{tpu_custom_call.1} parent=5 // pred_check
        _
      $region10: #{tpu_custom_call.1} parent=5 // pred_check_branch
        %210 = sbr.rel (%p207) target = $region12
      $region11: #{tpu_custom_call.1} parent=5 // pred_region
        %s211 = ssub.s32 %s19, 1
        // Predicated region
        $region13: #{tpu_custom_call.1} parent=11 // pred_check
          %p212 = pneg %p82
        $region14: #{tpu_custom_call.1} parent=11 // pred_check_branch
          %214 = sbr.rel (%p212) target = $region16
        $region15: #{tpu_custom_call.1} parent=11 // pred_region
          _
        $region16: #{tpu_custom_call.1} parent=11 // pred_fallthru
          _
        // Predicated region
        $region17: #{tpu_custom_call.1} parent=11 // pred_check
          %p215 = pneg %p103
        $region18: #{tpu_custom_call.1} parent=11 // pred_check_branch
          %217 = sbr.rel (%p215) target = $region20
        $region19: #{tpu_custom_call.1} parent=11 // pred_region
          _
        $region20: #{tpu_custom_call.1} parent=11 // pred_fallthru
          _
        // Predicated region
        $region21: #{tpu_custom_call.1} parent=11 // pred_check
          %p218 = pneg %p124
        $region22: #{tpu_custom_call.1} parent=11 // pred_check_branch
          %220 = sbr.rel (%p218) target = $region24
        $region23: #{tpu_custom_call.1} parent=11 // pred_region
          _
        $region24: #{tpu_custom_call.1} parent=11 // pred_fallthru
          _
        // Predicated region
        $region25: #{tpu_custom_call.1} parent=11 // pred_check
          %p221 = pneg %p145
        $region26: #{tpu_custom_call.1} parent=11 // pred_check_branch
          %223 = sbr.rel (%p221) target = $region28
        $region27: #{tpu_custom_call.1} parent=11 // pred_region
          _
        $region28: #{tpu_custom_call.1} parent=11 // pred_fallthru
          _
      $region12: #{tpu_custom_call.1} parent=5 // pred_fallthru
        _
      %p224 = scmp.lt.s32.totalorder %s19, 8
      // Predicated region
      $region29: #{tpu_custom_call.1} parent=5 // pred_check
        %p225 = pneg %p224
      $region30: #{tpu_custom_call.1} parent=5 // pred_check_branch
        %227 = sbr.rel (%p225) target = $region32
      $region31: #{tpu_custom_call.1} parent=5 // pred_region
        // Predicated region
        $region33: #{tpu_custom_call.1} parent=31 // pred_check
          %p228 = pneg %p55
        $region34: #{tpu_custom_call.1} parent=31 // pred_check_branch
          %230 = sbr.rel (%p228) target = $region36
        $region35: #{tpu_custom_call.1} parent=31 // pred_region
          %s231 = smul.u32 %s26, 4
          %s232 = sadd.s32 %s231, %s27
          %s233 = smul.u32 8, %s232
          %p234 = scmp.lt.s32.totalorder %s233, 63
          %s235 = scalar_select %p234, %s233, 63
          %s236 = smul.addr %s235, 4
          %s237 = scalar_lea.vmem %s0, %s236
          %s238 = smul.u32 %s26, 4
          %s239 = sadd.s32 %s238, %s27
          %s240 = smul.u32 8, %s239
        $region36: #{tpu_custom_call.1} parent=31 // pred_fallthru
          _
      $region32: #{tpu_custom_call.1} parent=5 // pred_fallthru
        _
      %p241 = scmp.le.s32.totalorder 1, %s19
      %p242 = scmp.lt.s32.totalorder %s19, 9
      %p243 = pnand %p241, %p242
      %p244 = pneg %p243
      // Predicated region
      $region37: #{tpu_custom_call.1} parent=5 // pred_check
        _
      $region38: #{tpu_custom_call.1} parent=5 // pred_check_branch
        %246 = sbr.rel (%p243) target = $region40
      $region39: #{tpu_custom_call.1} parent=5 // pred_region
        %s247 = ssub.s32 %s19, 1
        %s248 = smul.u32 %s28, 4
        %s249 = sadd.s32 %s248, %s29
        %s250 = smul.u32 8, %s249
        %p251 = scmp.lt.s32.totalorder %s250, 63
        %s252 = scalar_select %p251, %s250, 63
        %s253 = smul.addr %s252, 4
        %s254 = scalar_lea.vmem %s0, %s253
        %p255 = pneg %p61
        %p256 = pneg %p58
        %p257 = pneg %p82
        %p258 = pneg %p79
        %p259 = pneg %p103
        %p260 = pneg %p100
        %p261 = pneg %p124
        %p262 = pneg %p121
        %p263 = pneg %p145
        %p264 = pneg %p142
        %p265 = pneg %p171
        %p266 = pneg %p168
        %s267 = sand.u32 %s158, 1
        %s268 = scalar_lea.sflag [#allocation4], %s267
        %s269 = sand.u32 %s158, 1
        %s270 = scalar_lea.vmem [#allocation3], %s269
        %p271 = pneg %p197
        %p272 = pneg %p194
        %s273 = sand.u32 %s184, 1
        %s274 = scalar_lea.sflag [#allocation6], %s273
        %s275 = sand.u32 %s184, 1
        %s276 = scalar_lea.vmem [#allocation5], %s275
        %s277 = smul.u32 %s28, 4
        %s278 = sadd.s32 %s277, %s29
        %s279 = smul.u32 8, %s278
        %p280 = scmp.lt.s32.totalorder %s279, 63
        %s281 = scalar_select %p280, %s279, 63
        %s282 = smul.addr %s281, 4
        %s283 = scalar_lea.vmem %s0, %s282
        %s284 = smul.u32 %s28, 4
        %s285 = sadd.s32 %s284, %s29
        %s286 = smul.u32 8, %s285
        %p288 = scmp.eq.s32.totalorder %s29, 0
        // Predicated region
        $region41: #{tpu_custom_call.1} parent=39 // pred_check
          %p289 = pneg %p288
        $region42: #{tpu_custom_call.1} parent=39 // pred_check_branch
          %291 = sbr.rel (%p289) target = $region44
        $region43: #{tpu_custom_call.1} parent=39 // pred_region
          %292 = vst [vmem:[#allocation2] sm:$0x1] 0.0
        $region44: #{tpu_custom_call.1} parent=39 // pred_fallthru
          _
        %v293 = vld [vmem:[%s283] sm:$0xf]
        %v294 = vld [vmem:[%s283 + $0x4] sm:$0xf]
        %v295 = vld [vmem:[%s283 + $0x8] sm:$0xf]
        %v296 = vld [vmem:[%s283 + $0xc] sm:$0xf]
        %v297 = vld [vmem:[%s283 + $0x10] sm:$0xf]
        %v298 = vld [vmem:[%s283 + $0x14] sm:$0xf]
        %v299 = vld [vmem:[%s283 + $0x18] sm:$0xf]
        %v300 = vld [vmem:[%s283 + $0x1c] sm:$0xf]
        %v301 = vld [vmem:[%s1] sm:$0xf]
        %v302 = vld [vmem:[%s1 + $0x4] sm:$0xf]
        %v303 = vld [vmem:[%s1 + $0x8] sm:$0xf]
        %v304 = vld [vmem:[%s1 + $0xc] sm:$0xf]
        %v305 = vld [vmem:[%s1 + $0x10] sm:$0x3]
        %v306 = vld [vmem:[%s2] sm:$0x1]
        %v308 = vlaneseq
        %v309 = vshrl.u32 %v308, 7
        %v310 = vsub.s32 0, %v309
        %v311 = vrot.slane %v306, %v310
        %v321 = vunpack.c.l.b16 %v293
        %v322 = vunpack.c.l.b16 %v294
        %v323 = vunpack.c.l.b16 %v295
        %v324 = vunpack.c.l.b16 %v296
        %v325 = vunpack.c.l.b16 %v297
        %v326 = vunpack.c.l.b16 %v298
        %v327 = vunpack.c.l.b16 %v299
        %v328 = vunpack.c.l.b16 %v300
        %v329 = vpack.c.b16 %v322, %v321
        %v330 = vpack.c.b16 %v324, %v323
        %v331 = vpack.c.b16 %v326, %v325
        %v332 = vpack.c.b16 %v328, %v327
        %v338 = vunpack.c.l.b16 %v301
        %v339 = vunpack.c.l.b16 %v302
        %v340 = vunpack.c.l.b16 %v303
        %v341 = vunpack.c.l.b16 %v304
        %v342 = vunpack.c.l.b16 %v305
        %v343 = vpack.c.b16 %v339, %v338
        %v344 = vpack.c.b16 %v341, %v340
        %v345 = vpack.c.b16 %v342, %v342
        %vm348 = vcmask 293888
        %v350 = vsel %vm348, %v329, 0
        %v353 = vsel %vm348, %v330, 0
        %v356 = vsel %vm348, %v331, 0
        %v359 = vsel %vm348, %v332, 0
        %vm361 = vcmask 1041408
        %v363 = vsel %vm361, %v345, 0
        %365 = vmatprep.subr.bf16.mxu0 0
        %366 = vmatpush1.bf16.msra.mxu0 %v343
        %367 = vmatprep.subr.bf16.mxu0 0
        %368 = vmatpush1.bf16.msra.mxu0 %v344
        %369 = vmatprep.subr.bf16.mxu0 0
        %370 = vmatpush1.bf16.msra.mxu0 %v363
        %371 = vmatprep.subr.bf16.mxu0 0
        %372 = vmatpush1.bf16.msra.mxu0 0
        %373 = vmatprep.subr.bf16.mxu0 0
        %374 = vmatpush1.bf16.msra.mxu0 0
        %375 = vmatprep.subr.bf16.mxu0 0
        %376 = vmatpush1.bf16.msra.mxu0 0
        %377 = vmatprep.subr.bf16.mxu0 0
        %378 = vmatpush1.bf16.msra.mxu0 0
        %379 = vmatprep.subr.bf16.mxu0 0
        %380 = vmatpush1.bf16.msra.mxu0 0
        %381 = vmatprep.subr.bf16.mxu0 0
        %382 = vmatpush1.bf16.msra.mxu0 0
        %383 = vmatprep.subr.bf16.mxu0 0
        %384 = vmatpush1.bf16.msra.mxu0 0
        %385 = vmatprep.subr.bf16.mxu0 0
        %386 = vmatpush1.bf16.msra.mxu0 0
        %387 = vmatprep.subr.bf16.mxu0 0
        %388 = vmatpush1.bf16.msra.mxu0 0
        %389 = vmatprep.subr.bf16.mxu0 0
        %390 = vmatpush1.bf16.msra.mxu0 0
        %391 = vmatprep.subr.bf16.mxu0 0
        %392 = vmatpush1.bf16.msra.mxu0 0
        %393 = vmatprep.subr.bf16.mxu0 0
        %394 = vmatpush1.bf16.msra.mxu0 0
        %395 = vmatprep.subr.bf16.mxu0 0
        %396 = vmatpush1.bf16.msra.mxu0 0
        %397 = vmatprep.mubr.bf16.mxu0 0
        %398 = vmatmul.mubr.bf16.gmra.mrb[0].mxu0 %v350
        %v399 = vpop.f32.mrb[0].mxu0
        %v400 = vadd.f32 %v311, %v399
        %v401 = vpop.f32.mrb[0].mxu0
        %v402 = vpop.f32.mrb[0].mxu0
        %v403 = vadd.f32 %v311, %v402
        %v404 = vpop.f32.mrb[0].mxu0
        %405 = vmatprep.mubr.bf16.mxu0 0
        %406 = vmatmul.mubr.bf16.gmra.mrb[0].mxu0 %v353
        %v407 = vpop.f32.mrb[0].mxu0
        %v408 = vadd.f32 %v311, %v407
        %v409 = vpop.f32.mrb[0].mxu0
        %v410 = vpop.f32.mrb[0].mxu0
        %v411 = vadd.f32 %v311, %v410
        %v412 = vpop.f32.mrb[0].mxu0
        %413 = vmatprep.mubr.bf16.mxu0 0
        %414 = vmatmul.mubr.bf16.gmra.mrb[0].mxu0 %v356
        %v415 = vpop.f32.mrb[0].mxu0
        %v416 = vadd.f32 %v311, %v415
        %v417 = vpop.f32.mrb[0].mxu0
        %v418 = vpop.f32.mrb[0].mxu0
        %v419 = vadd.f32 %v311, %v418
        %v420 = vpop.f32.mrb[0].mxu0
        %421 = vmatprep.mubr.bf16.mxu0 0
        %422 = vmatmul.mubr.bf16.gmra.mrb[0].mxu0 %v359
        %v423 = vpop.f32.mrb[0].mxu0
        %v424 = vadd.f32 %v311, %v423
        %v425 = vpop.f32.mrb[0].mxu0
        %v426 = vpop.f32.mrb[0].mxu0
        %v427 = vadd.f32 %v311, %v426
        %v428 = vpop.f32.mrb[0].mxu0
        %429 = vdwg.mxu0
        %v430 = vmax.f32 %v400, 0.0
        %v431 = vmax.f32 %v403, 0.0
        %v432 = vmax.f32 %v408, 0.0
        %v433 = vmax.f32 %v411, 0.0
        %v434 = vmax.f32 %v416, 0.0
        %v435 = vmax.f32 %v419, 0.0
        %v436 = vmax.f32 %v424, 0.0
        %v437 = vmax.f32 %v427, 0.0
        %v438 = vld [vmem:[#allocation2] sm:$0x1]
        %v439 = vadd.f32 %v430, %v431
        %v440 = vadd.f32 %v439, %v432
        %v441 = vadd.f32 %v440, %v433
        %v442 = vadd.f32 %v441, %v434
        %v443 = vadd.f32 %v442, %v435
        %v444 = vadd.f32 %v443, %v436
        %v445 = vadd.f32 %v444, %v437
        %v446 = vrot.slane %v445, 4
        %v447 = vadd.f32 %v445, %v446
        %v448 = vrot.slane %v447, 2
        %v449 = vadd.f32 %v447, %v448
        %v450 = vrot.slane %v449, 1
        %v451 = vadd.f32 %v449, %v450
        %v452 = vadd.f32 %v438, %v451
        %453 = vst [vmem:[#allocation2] sm:$0x1] %v452
        %p454 = scmp.eq.s32.totalorder %s29, 3
        // Predicated region
        $region45: #{tpu_custom_call.1} parent=39 // pred_check
          %p455 = pneg %p454
        $region46: #{tpu_custom_call.1} parent=39 // pred_check_branch
          %457 = sbr.rel (%p455) target = $region48
        $region47: #{tpu_custom_call.1} parent=39 // pred_region
          %v458 = vld [vmem:[#allocation2] sm:$0x1]
          %v459 = vmul.f32 %v458, 0.00390625
          %460 = vst [vmem:[%s270] sm:$0x1] %v459
          %v461 = vld [vmem:[%s3] sm:$0xff]
          %v462 = vld [vmem:[%s3 + $0x8] sm:$0xff]
          %v463 = vld [vmem:[%s3 + $0x10] sm:$0xff]
          %v464 = vld [vmem:[%s3 + $0x18] sm:$0xff]
          %v465 = vld [vmem:[%s3 + $0x20] sm:$0xff]
          %v466 = vld [vmem:[%s3 + $0x28] sm:$0xff]
          %v467 = vld [vmem:[%s3 + $0x30] sm:$0xff]
          %v468 = vld [vmem:[%s3 + $0x38] sm:$0xff]
          %v469 = vld [vmem:[%s3 + $0x40] sm:$0xff]
          %v470 = vld [vmem:[%s3 + $0x48] sm:$0xff]
          %v471 = vld [vmem:[%s3 + $0x50] sm:$0xff]
          %v472 = vld [vmem:[%s3 + $0x58] sm:$0xff]
          %v473 = vld [vmem:[%s3 + $0x60] sm:$0xff]
          %v474 = vld [vmem:[%s3 + $0x68] sm:$0xff]
          %v475 = vld [vmem:[%s3 + $0x70] sm:$0xff]
          %v476 = vld [vmem:[%s3 + $0x78] sm:$0xff]
          %v477 = vld [vmem:[%s4] sm:$0x1]
          %478 = vmatprep.subr.mxu0 0.0
          %479 = vmatpush1.msra.mxu0 %v461
          %480 = vmatprep.subr.mxu0 0.0
          %481 = vmatpush1.msra.mxu0 %v462
          %482 = vmatprep.subr.mxu0 0.0
          %483 = vmatpush1.msra.mxu0 %v463
          %484 = vmatprep.subr.mxu0 0.0
          %485 = vmatpush1.msra.mxu0 %v464
          %486 = vmatprep.subr.mxu0 0.0
          %487 = vmatpush1.msra.mxu0 %v465
          %488 = vmatprep.subr.mxu0 0.0
          %489 = vmatpush1.msra.mxu0 %v466
          %490 = vmatprep.subr.mxu0 0.0
          %491 = vmatpush1.msra.mxu0 %v467
          %492 = vmatprep.subr.mxu0 0.0
          %493 = vmatpush1.msra.mxu0 %v468
          %494 = vmatprep.subr.mxu0 0.0
          %495 = vmatpush1.msra.mxu0 %v469
          %496 = vmatprep.subr.mxu0 0.0
          %497 = vmatpush1.msra.mxu0 %v470
          %498 = vmatprep.subr.mxu0 0.0
          %499 = vmatpush1.msra.mxu0 %v471
          %500 = vmatprep.subr.mxu0 0.0
          %501 = vmatpush1.msra.mxu0 %v472
          %502 = vmatprep.subr.mxu0 0.0
          %503 = vmatpush1.msra.mxu0 %v473
          %504 = vmatprep.subr.mxu0 0.0
          %505 = vmatpush1.msra.mxu0 %v474
          %506 = vmatprep.subr.mxu0 0.0
          %507 = vmatpush1.msra.mxu0 %v475
          %508 = vmatprep.subr.mxu0 0.0
          %509 = vmatpush1.msra.mxu0 %v476
          %510 = vmatprep.subr.mxu0 0.0
          %511 = vmatpush1.msra.mxu0 0.0
          %512 = vmatprep.subr.mxu0 0.0
          %513 = vmatpush1.msra.mxu0 0.0
          %514 = vmatprep.subr.mxu0 0.0
          %515 = vmatpush1.msra.mxu0 0.0
          %516 = vmatprep.subr.mxu0 0.0
          %517 = vmatpush1.msra.mxu0 0.0
          %518 = vmatprep.subr.mxu0 0.0
          %519 = vmatpush1.msra.mxu0 0.0
          %520 = vmatprep.subr.mxu0 0.0
          %521 = vmatpush1.msra.mxu0 0.0
          %522 = vmatprep.subr.mxu0 0.0
          %523 = vmatpush1.msra.mxu0 0.0
          %524 = vmatprep.subr.mxu0 0.0
          %525 = vmatpush1.msra.mxu0 0.0
          %526 = vmatprep.subr.mxu0 0.0
          %527 = vmatpush1.msra.mxu0 0.0
          %528 = vmatprep.subr.mxu0 0.0
          %529 = vmatpush1.msra.mxu0 0.0
          %530 = vmatprep.subr.mxu0 0.0
          %531 = vmatpush1.msra.mxu0 0.0
          %532 = vmatprep.subr.mxu0 0.0
          %533 = vmatpush1.msra.mxu0 0.0
          %534 = vmatprep.subr.mxu0 0.0
          %535 = vmatpush1.msra.mxu0 0.0
          %536 = vmatprep.subr.mxu0 0.0
          %537 = vmatpush1.msra.mxu0 0.0
          %538 = vmatprep.subr.mxu0 0.0
          %539 = vmatpush1.msra.mxu0 0.0
          %540 = vmatprep.subr.mxu0 0.0
          %541 = vmatpush1.msra.mxu0 0.0
          %542 = vmatprep.mubr.f32.mxu0 0.0
          %543 = vmatmul.mubr.f32.gmra.mrb[0].mxu0 %v459
          %v544 = vpop.f32.mrb[0].mxu0
          %v545 = vadd.f32 %v477, %v544
          %v546 = vpop.f32.mrb[0].mxu0
          %547 = vdwg.mxu0
          %548 = vst [vmem:[%s276] sm:$0x1] %v545
        $region48: #{tpu_custom_call.1} parent=39 // pred_fallthru
          _
        %s549 = sand.u32 %s158, 1
        %s550 = scalar_lea.sflag [#allocation4], %s549
        %s551 = sand.u32 %s158, 1
        %s552 = scalar_lea.vmem [#allocation3], %s551
        %s553 = sand.u32 %s184, 1
        %s554 = scalar_lea.sflag [#allocation6], %s553
        %s555 = sand.u32 %s184, 1
        %s556 = scalar_lea.vmem [#allocation5], %s555
        // Predicated region
        $region49: #{tpu_custom_call.1} parent=39 // pred_check
          %p557 = pneg %p168
        $region50: #{tpu_custom_call.1} parent=39 // pred_check_branch
          %559 = sbr.rel (%p557) target = $region52
        $region51: #{tpu_custom_call.1} parent=39 // pred_region
          %s561 = ssub.s32 16, 16
          %562 = vsyncadd %s550, %s561
          %s563 = smul.addr %s28, 16
          %s564 = scalar_lea.hbm %s5, %s563
          %s566 = sshll.u32 %s552, 4
          %s567 = int_to_ptr.vmem [resolvable:$true] %s566
          %569 = dma.vmem_to_hbm [thread:$0]  %s567, 16, %s564, %s550
        $region52: #{tpu_custom_call.1} parent=39 // pred_fallthru
          _
        // Predicated region
        $region53: #{tpu_custom_call.1} parent=39 // pred_check
          %p570 = pneg %p194
        $region54: #{tpu_custom_call.1} parent=39 // pred_check_branch
          %572 = sbr.rel (%p570) target = $region56
        $region55: #{tpu_custom_call.1} parent=39 // pred_region
          %s574 = ssub.s32 16, 16
          %575 = vsyncadd %s554, %s574
          %s576 = smul.addr %s28, 16
          %s577 = scalar_lea.hbm %s6, %s576
          %s579 = sshll.u32 %s556, 4
          %s580 = int_to_ptr.vmem [resolvable:$true] %s579
          %582 = dma.vmem_to_hbm [thread:$0]  %s580, 16, %s577, %s554
        $region56: #{tpu_custom_call.1} parent=39 // pred_fallthru
          _
      $region40: #{tpu_custom_call.1} parent=5 // pred_fallthru
        _
      %p583 = scmp.le.s32.totalorder 2, %s19
      // Predicated region
      $region57: #{tpu_custom_call.1} parent=5 // pred_check
        %p584 = pneg %p583
      $region58: #{tpu_custom_call.1} parent=5 // pred_check_branch
        %586 = sbr.rel (%p584) target = $region60
      $region59: #{tpu_custom_call.1} parent=5 // pred_region
        %s587 = ssub.s32 %s19, 2
        // Predicated region
        $region61: #{tpu_custom_call.1} parent=59 // pred_check
          %p588 = pneg %p174
        $region62: #{tpu_custom_call.1} parent=59 // pred_check_branch
          %590 = sbr.rel (%p588) target = $region64
        $region63: #{tpu_custom_call.1} parent=59 // pred_region
          %s591 = sand.u32 %s159, 1
          %s592 = scalar_lea.sflag [#allocation4], %s591
          %s593 = sand.u32 %s159, 1
          %s594 = scalar_lea.vmem [#allocation3], %s593
          %595 = dma.done %s592, 16
        $region64: #{tpu_custom_call.1} parent=59 // pred_fallthru
          _
        // Predicated region
        $region65: #{tpu_custom_call.1} parent=59 // pred_check
          %p596 = pneg %p200
        $region66: #{tpu_custom_call.1} parent=59 // pred_check_branch
          %598 = sbr.rel (%p596) target = $region68
        $region67: #{tpu_custom_call.1} parent=59 // pred_region
          %s599 = sand.u32 %s185, 1
          %s600 = scalar_lea.sflag [#allocation6], %s599
          %s601 = sand.u32 %s185, 1
          %s602 = scalar_lea.vmem [#allocation5], %s601
          %603 = dma.done %s600, 16
        $region68: #{tpu_custom_call.1} parent=59 // pred_fallthru
          _
      $region60: #{tpu_custom_call.1} parent=5 // pred_fallthru
        _
    $region6: #{tpu_custom_call.1} parent=1 // loop_footer
      %s23 = sadd.s32 1, %s19
    $region7: #{tpu_custom_call.1} parent=1 // loop_footer_branch
      %18 = sbr.rel target = $region3
    $region8: #{tpu_custom_call.1} parent=1 // loop_exit
      _
    %604 = vsyncpa [#allocation4], 1
    %s605 = scalar_lea.sflag [#allocation4], 1
    %606 = vsyncpa %s605, 1
    %607 = vsyncpa [#allocation6], 1
    %s608 = scalar_lea.sflag [#allocation6], 1
    %609 = vsyncpa %s608, 1

</llo_original>
